<compile_context>
chip_gen: v6e
topology: v6e:2x2x1
jax: 0.10.0
libtpu: 0.0.40
codegen_flags: <defaults>
</compile_context>

<pallas_src>
import jax
import jax.numpy as jnp
from jax.experimental import pallas as pl
from jax.experimental.pallas import tpu as pltpu


def _rup(n, m):
    return ((n + m - 1) // m) * m


# ----------------------------------------------------------------------------- kernel
def _make_kernel(n_mid, hpad, out_dim):
    """n_mid: number of packed mid layers (fc2..fc6), hpad: uniform hidden lane width."""

    def kernel(x_ref, t_ref, w1_ref, wmid_ref, w7x_ref, bias_ref, o_ref):
        def lin_relu(h, w, b):
            y = jnp.dot(h, w, preferred_element_type=jnp.float32) + b
            return jnp.maximum(y, 0.0)

        # fc1 -> uniform hpad(=128)-lane hidden state
        h = lin_relu(x_ref[...], w1_ref[...], bias_ref[0:1, 0:hpad])

        # fc2..fc6 from the packed [n_mid*hpad, hpad] slab (static, lane-dense slices)
        for i in range(n_mid):
            h = lin_relu(
                h,
                wmid_ref[i * hpad:(i + 1) * hpad, :],
                bias_ref[i + 1:i + 2, 0:hpad],
            )

        # fc7 on concat([h, time]):  h @ W7x + t * w7t + b7   (exact)
        t = t_ref[...]                                          # [TB, 1]
        out = (
            jnp.dot(h, w7x_ref[...], preferred_element_type=jnp.float32)
            + t * bias_ref[7:8, 0:out_dim]                      # time column of W7
            + bias_ref[6:7, 0:out_dim]                          # b7
        )
        o_ref[...] = out.astype(o_ref.dtype)

    return kernel


# ----------------------------------------------------------------------------- wrapper
def simple_model_forward(x, time, packed, *, block_b=512):
    """x: [B, input_dim] f32, time: [B] f32, packed: output of pack_params()."""
    B, d_in = x.shape
    out_dim = packed["w7x"].shape[1]
    hpad = packed["hpad"]
    n_mid = packed["n_mid"]

    t2d = time.reshape(B, 1).astype(jnp.float32)

    # Batch tiling: sublane-aligned tiles.  Big tiles for the streaming-bound
    # large-B regime, but capped at ceil(B/2) so the grid has >= 2 steps and
    # both TensorCores on v7x get work.  B<=8 collapses to a single step.
    if B <= 8:
        tb = _rup(B, 8)
    else:
        tb = max(8, min(block_b, _rup(pl.cdiv(B, 2), 8)))
    b_pad = _rup(B, tb)
    if b_pad != B:
        x = jnp.pad(x, ((0, b_pad - B), (0, 0)))
        t2d = jnp.pad(t2d, ((0, b_pad - B), (0, 0)))

    kernel = _make_kernel(n_mid, hpad, out_dim)

    flops_per_row = 2 * (d_in * hpad + n_mid * hpad * hpad + hpad * out_dim) + 2 * out_dim
    param_bytes = sum(int(packed[k].size) * 4 for k in ("w1", "wmid", "w7x", "bias"))
    cost = pl.CostEstimate(
        flops=flops_per_row * b_pad,
        transcendentals=0,
        bytes_accessed=param_bytes + 4 * b_pad * (d_in + 1 + out_dim),
    )

    grid_spec = pltpu.PrefetchScalarGridSpec(
        num_scalar_prefetch=0,
        grid=(b_pad // tb,),
        in_specs=[
            pl.BlockSpec((tb, d_in), lambda i: (i, 0)),              # x tile (streamed)
            pl.BlockSpec((tb, 1), lambda i: (i, 0)),                 # time tile (streamed)
            pl.BlockSpec(packed["w1"].shape, lambda i: (0, 0)),      # resident weights
            pl.BlockSpec(packed["wmid"].shape, lambda i: (0, 0)),
            pl.BlockSpec(packed["w7x"].shape, lambda i: (0, 0)),
            pl.BlockSpec(packed["bias"].shape, lambda i: (0, 0)),
        ],
        out_specs=pl.BlockSpec((tb, out_dim), lambda i: (i, 0)),
    )

    out = pl.pallas_call(
        kernel,
        out_shape=jax.ShapeDtypeStruct((b_pad, out_dim), jnp.float32),
        grid_spec=grid_spec,
        compiler_params=pltpu.CompilerParams(dimension_semantics=("parallel",)),
        cost_estimate=cost,
    )(x, t2d, packed["w1"], packed["wmid"], packed["w7x"], packed["bias"])

    return out[:B]


# ----------------------------------------------------------------------------- params
def _layer_dims(input_dim, output_dim):
    return [
        (input_dim, input_dim // 16),          # fc1
        (input_dim // 16, input_dim // 32),    # fc2
        (input_dim // 32, output_dim // 64),   # fc3
        (output_dim // 64, output_dim // 32),  # fc4
        (output_dim // 32, output_dim // 32),  # fc5
        (output_dim // 32, output_dim // 16),  # fc6
        (output_dim // 16 + 1, output_dim),    # fc7 (includes +1 time feature)
    ]


def init_params(key, input_dim, output_dim):
    """Deterministic synthetic init matching nn.Linear shapes (weights stored [in, out])."""
    assert input_dim % 32 == 0 and output_dim % 64 == 0, (
        "input_dim must be a multiple of 32 and output_dim a multiple of 64")
    dims = _layer_dims(input_dim, output_dim)
    params = {}
    keys = jax.random.split(key, 2 * len(dims))
    for i, (din, dout) in enumerate(dims, start=1):
        scale = 1.0 / jnp.sqrt(jnp.float32(din))
        w = jax.random.uniform(keys[2 * (i - 1)], (din, dout),
                               minval=-scale, maxval=scale, dtype=jnp.float32)
        b = jax.random.uniform(keys[2 * (i - 1) + 1], (1, dout),
                               minval=-scale, maxval=scale, dtype=jnp.float32)
        if i == 7:
            params["w7x"] = w[:-1, :]   # part applied to h
            params["w7t"] = w[-1:, :]   # part applied to time
            params["b7"] = b
        else:
            params[f"w{i}"] = w
            params[f"b{i}"] = b
    return params


def pack_params(params, input_dim, output_dim):
    """Pack the 15 raw parameter arrays into 4 lane-dense kernel inputs + static layout."""
    dims = _layer_dims(input_dim, output_dim)
    hidden_dims = [dout for _, dout in dims[:6]]
    hpad = _rup(max(hidden_dims), 128)          # uniform 128-lane hidden width

    # fc1: [input_dim, hpad], zero-padded columns
    w1 = jnp.zeros((input_dim, hpad), jnp.float32).at[:, :dims[0][1]].set(params["w1"])

    # fc2..fc6: five [hpad, hpad] zero-padded blocks stacked into one slab
    blocks = []
    for li in range(2, 7):
        din, dout = dims[li - 1]
        blk = jnp.zeros((hpad, hpad), jnp.float32).at[:din, :dout].set(params[f"w{li}"])
        blocks.append(blk)
    wmid = jnp.concatenate(blocks, axis=0)       # [5*hpad, hpad]

    # fc7 (x-part): [hpad, output_dim], zero-padded rows (time column lives in bias slab)
    h7 = dims[6][0] - 1
    w7x = jnp.zeros((hpad, output_dim), jnp.float32).at[:h7, :].set(params["w7x"])

    # b1..b6 (rows 0..5, zero-padded to hpad lanes), b7 (row 6), w7t (row 7)
    bw = _rup(max(output_dim, hpad), 128)
    bias = jnp.zeros((8, bw), jnp.float32)
    for r in range(6):
        dout = dims[r][1]
        bias = bias.at[r, :dout].set(params[f"b{r + 1}"][0])
    bias = bias.at[6, :output_dim].set(params["b7"][0])
    bias = bias.at[7, :output_dim].set(params["w7t"][0])

    return {
        "w1": w1,
        "wmid": wmid,
        "w7x": w7x,
        "bias": bias,
        "hpad": hpad,
        "n_mid": 5,
    }


# ----------------------------------------------------------------------------- reference
def reference_forward(x, time, params):
    """Plain-JAX reference mirroring the PyTorch forward exactly."""
    h = x
    for i in range(1, 7):
        h = jnp.maximum(h @ params[f"w{i}"] + params[f"b{i}"], 0.0)
    t = time.reshape(x.shape[0], 1)
    h = jnp.concatenate([h, t], axis=-1)
    w7 = jnp.concatenate([params["w7x"], params["w7t"]], axis=0)
    return h @ w7 + params["b7"]


if __name__ == "__main__":
    INPUT_DIM = 512
    OUTPUT_DIM = 512
    BATCH = 8

    key = jax.random.PRNGKey(0)
    kx, kt, kp = jax.random.split(key, 3)

    raw_params = init_params(kp, INPUT_DIM, OUTPUT_DIM)
    packed = pack_params(raw_params, INPUT_DIM, OUTPUT_DIM)

    # Small demo batch (single grid step)
    x = jax.random.normal(kx, (BATCH, INPUT_DIM), dtype=jnp.float32)
    time = jax.random.normal(kt, (BATCH,), dtype=jnp.float32)
    out = jax.block_until_ready(simple_model_forward(x, time, packed))
    ref = reference_forward(x, time, raw_params)
    assert out.shape == (BATCH, OUTPUT_DIM)
    assert jnp.allclose(out, ref, atol=1e-4, rtol=1e-4), float(jnp.max(jnp.abs(out - ref)))

    # Multi-tile batch (exercises the 2-step parallel grid / padding path)
    B2 = 256
    kx2, kt2 = jax.random.split(jax.random.PRNGKey(1))
    x2 = jax.random.normal(kx2, (B2, INPUT_DIM), dtype=jnp.float32)
    time2 = jax.random.normal(kt2, (B2,), dtype=jnp.float32)
    out2 = jax.block_until_ready(simple_model_forward(x2, time2, packed))
    ref2 = reference_forward(x2, time2, raw_params)
    assert out2.shape == (B2, OUTPUT_DIM)
    assert jnp.allclose(out2, ref2, atol=1e-4, rtol=1e-4), float(jnp.max(jnp.abs(out2 - ref2)))

    print("KERNEL_OK")
</pallas_src>

<mosaic_0001>
module attributes {stable_mosaic.version = 11 : i64} {
  func.func @kernel(%arg0: i32, %arg1: memref<8x512xf32, #tpu.memory_space<vmem>>, %arg2: memref<8x1xf32, #tpu.memory_space<vmem>>, %arg3: memref<512x128xf32, #tpu.memory_space<vmem>>, %arg4: memref<640x128xf32, #tpu.memory_space<vmem>>, %arg5: memref<128x512xf32, #tpu.memory_space<vmem>>, %arg6: memref<8x512xf32, #tpu.memory_space<vmem>>, %arg7: memref<8x512xf32, #tpu.memory_space<vmem>>) attributes {dimension_semantics = [#tpu.dimension_semantics<parallel>], iteration_bounds = array<i64: 1>, scalar_prefetch = 0 : i64, scratch_operands = 0 : i64, tpu.core_type = #tpu.core_type<tc>, window_params = [{transform_indices = @transform_0, window_bounds = array<i64: 8, 512>}, {transform_indices = @transform_1, window_bounds = array<i64: 8, 1>}, {pipeline_mode = #tpu.pipeline_mode<synchronous>, transform_indices = @transform_2, window_bounds = array<i64: 512, 128>}, {pipeline_mode = #tpu.pipeline_mode<synchronous>, transform_indices = @transform_3, window_bounds = array<i64: 640, 128>}, {pipeline_mode = #tpu.pipeline_mode<synchronous>, transform_indices = @transform_4, window_bounds = array<i64: 128, 512>}, {pipeline_mode = #tpu.pipeline_mode<synchronous>, transform_indices = @transform_5, window_bounds = array<i64: 8, 512>}, {transform_indices = @transform_6, window_bounds = array<i64: 8, 512>}]} {
    %c0 = arith.constant 0 : index
    %c0_0 = arith.constant 0 : index
    %0 = vector.load %arg1[%c0, %c0_0] : memref<8x512xf32, #tpu.memory_space<vmem>>, vector<8x512xf32>
    %c0_1 = arith.constant 0 : index
    %c0_2 = arith.constant 0 : index
    %1 = vector.load %arg3[%c0_1, %c0_2] : memref<512x128xf32, #tpu.memory_space<vmem>>, vector<512x128xf32>
    %c0_3 = arith.constant 0 : index
    %c0_4 = arith.constant 0 : index
    %2 = vector.load %arg6[%c0_3, %c0_4] : memref<8x512xf32, #tpu.memory_space<vmem>>, vector<1x128xf32>
    %cst = arith.constant dense<0.000000e+00> : vector<8x128xf32>
    %3 = tpu.matmul %0, %1, %cst {dimension_numbers = #tpu.dot_dimension_numbers<[1], [0], [0], [1], [0, 0, 1, 1], [], []>} : vector<8x512xf32>, vector<512x128xf32>, vector<8x128xf32> -> vector<8x128xf32>
    %4 = vector.broadcast %2 : vector<1x128xf32> to vector<8x128xf32>
    %5 = arith.addf %3, %4 : vector<8x128xf32>
    %cst_5 = arith.constant 0.000000e+00 : f32
    %6 = vector.broadcast %cst_5 : f32 to vector<8x128xf32>
    %7 = arith.maximumf %5, %6 : vector<8x128xf32>
    %c0_6 = arith.constant 0 : index
    %c0_7 = arith.constant 0 : index
    %8 = vector.load %arg4[%c0_6, %c0_7] : memref<640x128xf32, #tpu.memory_space<vmem>>, vector<128x128xf32>
    %c1 = arith.constant 1 : index
    %c0_8 = arith.constant 0 : index
    %9 = vector.load %arg6[%c1, %c0_8] : memref<8x512xf32, #tpu.memory_space<vmem>>, vector<1x128xf32>
    %cst_9 = arith.constant dense<0.000000e+00> : vector<8x128xf32>
    %10 = tpu.matmul %7, %8, %cst_9 {dimension_numbers = #tpu.dot_dimension_numbers<[1], [0], [0], [1], [0, 0, 1, 1], [], []>} : vector<8x128xf32>, vector<128x128xf32>, vector<8x128xf32> -> vector<8x128xf32>
    %11 = vector.broadcast %9 : vector<1x128xf32> to vector<8x128xf32>
    %12 = arith.addf %10, %11 : vector<8x128xf32>
    %cst_10 = arith.constant 0.000000e+00 : f32
    %13 = vector.broadcast %cst_10 : f32 to vector<8x128xf32>
    %14 = arith.maximumf %12, %13 : vector<8x128xf32>
    %c128 = arith.constant 128 : index
    %c0_11 = arith.constant 0 : index
    %15 = vector.load %arg4[%c128, %c0_11] : memref<640x128xf32, #tpu.memory_space<vmem>>, vector<128x128xf32>
    %c2 = arith.constant 2 : index
    %c0_12 = arith.constant 0 : index
    %16 = vector.load %arg6[%c2, %c0_12] : memref<8x512xf32, #tpu.memory_space<vmem>>, vector<1x128xf32>
    %cst_13 = arith.constant dense<0.000000e+00> : vector<8x128xf32>
    %17 = tpu.matmul %14, %15, %cst_13 {dimension_numbers = #tpu.dot_dimension_numbers<[1], [0], [0], [1], [0, 0, 1, 1], [], []>} : vector<8x128xf32>, vector<128x128xf32>, vector<8x128xf32> -> vector<8x128xf32>
    %18 = vector.broadcast %16 : vector<1x128xf32> to vector<8x128xf32>
    %19 = arith.addf %17, %18 : vector<8x128xf32>
    %cst_14 = arith.constant 0.000000e+00 : f32
    %20 = vector.broadcast %cst_14 : f32 to vector<8x128xf32>
    %21 = arith.maximumf %19, %20 : vector<8x128xf32>
    %c256 = arith.constant 256 : index
    %c0_15 = arith.constant 0 : index
    %22 = vector.load %arg4[%c256, %c0_15] : memref<640x128xf32, #tpu.memory_space<vmem>>, vector<128x128xf32>
    %c3 = arith.constant 3 : index
    %c0_16 = arith.constant 0 : index
    %23 = vector.load %arg6[%c3, %c0_16] : memref<8x512xf32, #tpu.memory_space<vmem>>, vector<1x128xf32>
    %cst_17 = arith.constant dense<0.000000e+00> : vector<8x128xf32>
    %24 = tpu.matmul %21, %22, %cst_17 {dimension_numbers = #tpu.dot_dimension_numbers<[1], [0], [0], [1], [0, 0, 1, 1], [], []>} : vector<8x128xf32>, vector<128x128xf32>, vector<8x128xf32> -> vector<8x128xf32>
    %25 = vector.broadcast %23 : vector<1x128xf32> to vector<8x128xf32>
    %26 = arith.addf %24, %25 : vector<8x128xf32>
    %cst_18 = arith.constant 0.000000e+00 : f32
    %27 = vector.broadcast %cst_18 : f32 to vector<8x128xf32>
    %28 = arith.maximumf %26, %27 : vector<8x128xf32>
    %c384 = arith.constant 384 : index
    %c0_19 = arith.constant 0 : index
    %29 = vector.load %arg4[%c384, %c0_19] : memref<640x128xf32, #tpu.memory_space<vmem>>, vector<128x128xf32>
    %c4 = arith.constant 4 : index
    %c0_20 = arith.constant 0 : index
    %30 = vector.load %arg6[%c4, %c0_20] : memref<8x512xf32, #tpu.memory_space<vmem>>, vector<1x128xf32>
    %cst_21 = arith.constant dense<0.000000e+00> : vector<8x128xf32>
    %31 = tpu.matmul %28, %29, %cst_21 {dimension_numbers = #tpu.dot_dimension_numbers<[1], [0], [0], [1], [0, 0, 1, 1], [], []>} : vector<8x128xf32>, vector<128x128xf32>, vector<8x128xf32> -> vector<8x128xf32>
    %32 = vector.broadcast %30 : vector<1x128xf32> to vector<8x128xf32>
    %33 = arith.addf %31, %32 : vector<8x128xf32>
    %cst_22 = arith.constant 0.000000e+00 : f32
    %34 = vector.broadcast %cst_22 : f32 to vector<8x128xf32>
    %35 = arith.maximumf %33, %34 : vector<8x128xf32>
    %c512 = arith.constant 512 : index
    %c0_23 = arith.constant 0 : index
    %36 = vector.load %arg4[%c512, %c0_23] : memref<640x128xf32, #tpu.memory_space<vmem>>, vector<128x128xf32>
    %c5 = arith.constant 5 : index
    %c0_24 = arith.constant 0 : index
    %37 = vector.load %arg6[%c5, %c0_24] : memref<8x512xf32, #tpu.memory_space<vmem>>, vector<1x128xf32>
    %cst_25 = arith.constant dense<0.000000e+00> : vector<8x128xf32>
    %38 = tpu.matmul %35, %36, %cst_25 {dimension_numbers = #tpu.dot_dimension_numbers<[1], [0], [0], [1], [0, 0, 1, 1], [], []>} : vector<8x128xf32>, vector<128x128xf32>, vector<8x128xf32> -> vector<8x128xf32>
    %39 = vector.broadcast %37 : vector<1x128xf32> to vector<8x128xf32>
    %40 = arith.addf %38, %39 : vector<8x128xf32>
    %cst_26 = arith.constant 0.000000e+00 : f32
    %41 = vector.broadcast %cst_26 : f32 to vector<8x128xf32>
    %42 = arith.maximumf %40, %41 : vector<8x128xf32>
    %c0_27 = arith.constant 0 : index
    %c0_28 = arith.constant 0 : index
    %43 = vector.load %arg2[%c0_27, %c0_28] : memref<8x1xf32, #tpu.memory_space<vmem>>, vector<8x1xf32>
    %c0_29 = arith.constant 0 : index
    %c0_30 = arith.constant 0 : index
    %44 = vector.load %arg5[%c0_29, %c0_30] : memref<128x512xf32, #tpu.memory_space<vmem>>, vector<128x512xf32>
    %cst_31 = arith.constant dense<0.000000e+00> : vector<8x512xf32>
    %45 = tpu.matmul %42, %44, %cst_31 {dimension_numbers = #tpu.dot_dimension_numbers<[1], [0], [0], [1], [0, 0, 1, 1], [], []>} : vector<8x128xf32>, vector<128x512xf32>, vector<8x512xf32> -> vector<8x512xf32>
    %c7 = arith.constant 7 : index
    %c0_32 = arith.constant 0 : index
    %46 = vector.load %arg6[%c7, %c0_32] : memref<8x512xf32, #tpu.memory_space<vmem>>, vector<1x512xf32>
    %47 = vector.broadcast %43 : vector<8x1xf32> to vector<8x512xf32>
    %48 = vector.broadcast %46 : vector<1x512xf32> to vector<8x512xf32>
    %49 = arith.mulf %47, %48 : vector<8x512xf32>
    %50 = arith.addf %45, %49 : vector<8x512xf32>
    %c6 = arith.constant 6 : index
    %c0_33 = arith.constant 0 : index
    %51 = vector.load %arg6[%c6, %c0_33] : memref<8x512xf32, #tpu.memory_space<vmem>>, vector<1x512xf32>
    %52 = vector.broadcast %51 : vector<1x512xf32> to vector<8x512xf32>
    %53 = arith.addf %50, %52 : vector<8x512xf32>
    %c0_34 = arith.constant 0 : index
    %c0_35 = arith.constant 0 : index
    %54 = vector.load %arg7[%c0_34, %c0_35] : memref<8x512xf32, #tpu.memory_space<vmem>>, vector<8x512xf32>
    tpu.vector_store %arg7[%c0_34, %c0_35], %53 {strides = array<i32>} : memref<8x512xf32, #tpu.memory_space<vmem>>, vector<8x512xf32>,
    return
  }
  func.func @transform_0(%arg0: i32) -> (i32, i32) {
    %c0_i32 = arith.constant 0 : i32
    %c0_i32_0 = arith.constant 0 : i32
    return %arg0, %c0_i32 : i32, i32
  }
  func.func @transform_1(%arg0: i32) -> (i32, i32) {
    %c0_i32 = arith.constant 0 : i32
    %c0_i32_0 = arith.constant 0 : i32
    return %arg0, %c0_i32 : i32, i32
  }
  func.func @transform_2(%arg0: i32) -> (i32, i32) {
    %c0_i32 = arith.constant 0 : i32
    %c0_i32_0 = arith.constant 0 : i32
    %c0_i32_1 = arith.constant 0 : i32
    return %c0_i32, %c0_i32_0 : i32, i32
  }
  func.func @transform_3(%arg0: i32) -> (i32, i32) {
    %c0_i32 = arith.constant 0 : i32
    %c0_i32_0 = arith.constant 0 : i32
    %c0_i32_1 = arith.constant 0 : i32
    return %c0_i32, %c0_i32_0 : i32, i32
  }
  func.func @transform_4(%arg0: i32) -> (i32, i32) {
    %c0_i32 = arith.constant 0 : i32
    %c0_i32_0 = arith.constant 0 : i32
    %c0_i32_1 = arith.constant 0 : i32
    return %c0_i32, %c0_i32_0 : i32, i32
  }
  func.func @transform_5(%arg0: i32) -> (i32, i32) {
    %c0_i32 = arith.constant 0 : i32
    %c0_i32_0 = arith.constant 0 : i32
    %c0_i32_1 = arith.constant 0 : i32
    return %c0_i32, %c0_i32_0 : i32, i32
  }
  func.func @transform_6(%arg0: i32) -> (i32, i32) {
    %c0_i32 = arith.constant 0 : i32
    %c0_i32_0 = arith.constant 0 : i32
    return %arg0, %c0_i32 : i32, i32
  }
}

</mosaic_0001>

<llo_original>
// kernel: tpu_custom_call.1
$region0: #{tpu_custom_call.1}
  #allocation0 [shape = 'u32[]', space=smem, size = 0x4, offset = 0x4, fixed_abs, tag = 'smem constant byte address 0x4 - core index']
  #allocation1 [shape = 'u32[144,128]{1,0:T(1,128)}', space=vmem, size = 0x12000, scoped, tag = 'internal scratch']
  %s0 = inlined_call_operand.hbm [shape: f32[8,512], index: 0, kind: input, shape index: {}]
  %s1 = inlined_call_operand.vmem [shape: f32[8,1], index: 1, kind: input, shape index: {}]
  %s2 = inlined_call_operand.hbm [shape: f32[512,128], index: 2, kind: input, shape index: {}]
  %s3 = inlined_call_operand.hbm [shape: f32[640,128], index: 3, kind: input, shape index: {}]
  %s4 = inlined_call_operand.hbm [shape: f32[128,512], index: 4, kind: input, shape index: {}]
  %s5 = inlined_call_operand.hbm [shape: f32[8,512], index: 5, kind: input, shape index: {}]
  %s6 = inlined_call_operand.hbm [shape: f32[8,512], index: 6, kind: output, shape index: {}]
  %s7 = sld [smem:[#allocation0]]
  $region54: #{tpu_custom_call.1} parent=0
    _
  %s9 = ssub.s32 1, %s7
  %s10 = scalar_select 0, %s9, %s7
  $region1: #{tpu_custom_call.1} parent=0
    #allocation2 [shape = 'u8[16384]{0}', space=vmem, size = 0x4000, scoped, tag = 'input window, operand 0, single buffered']
    #allocation3 [shape = 's32[1]{0}', space=sflag, size = 0x4, scoped, tag = 'scoped memory for tpu_custom_call.1']
    #allocation4 [shape = 's32[1]{0}', space=sflag, size = 0x4, scoped, tag = 'scoped memory for tpu_custom_call.1']
    #allocation5 [shape = 'u8[262144]{0}', space=vmem, size = 0x40000, scoped, tag = 'input window, operand 2, single buffered']
    #allocation6 [shape = 's32[1]{0}', space=sflag, size = 0x4, scoped, tag = 'scoped memory for tpu_custom_call.1']
    #allocation7 [shape = 'u8[327680]{0}', space=vmem, size = 0x50000, scoped, tag = 'input window, operand 3, single buffered']
    #allocation8 [shape = 'u8[262144]{0}', space=vmem, size = 0x40000, scoped, tag = 'input window, operand 4, single buffered']
    #allocation9 [shape = 's32[1]{0}', space=sflag, size = 0x4, scoped, tag = 'scoped memory for tpu_custom_call.1']
    #allocation10 [shape = 'u8[16384]{0}', space=vmem, size = 0x4000, scoped, tag = 'input window, operand 5, single buffered']
    #allocation11 [shape = 'u8[16384]{0}', space=vmem, size = 0x4000, scoped, tag = 'output window, operand 0, single buffered']
    %11 = vsyncpa [#allocation3], 0
    %12 = vsyncpa [#allocation6], 0
    %13 = vsyncpa [#allocation9], 0
    %14 = vsyncpa [#allocation4], 0
    // Predicated region
    $region2: #{tpu_custom_call.1} parent=1 // pred_check
      _
    $region3: #{tpu_custom_call.1} parent=1 // pred_check_branch
      %16 = sbr.rel (0) target = $region5
    $region4: #{tpu_custom_call.1} parent=1 // pred_region
      %s18 = ssub.s32 512, 512
      %19 = vsyncadd [#allocation3], %s18
      %s21 = sshll.u32 [#allocation2], 4
      %s22 = int_to_ptr.vmem [resolvable:$true] %s21
      %24 = dma.hbm_to_vmem [thread:$0]  %s0, 512, %s22, [#allocation3]
    $region5: #{tpu_custom_call.1} parent=1 // pred_fallthru
      _
    // Predicated region
    $region6: #{tpu_custom_call.1} parent=1 // pred_check
      _
    $region7: #{tpu_custom_call.1} parent=1 // pred_check_branch
      %26 = sbr.rel (0) target = $region9
    $region8: #{tpu_custom_call.1} parent=1 // pred_region
      _
    $region9: #{tpu_custom_call.1} parent=1 // pred_fallthru
      _
    // Predicated region
    $region10: #{tpu_custom_call.1} parent=1 // pred_check
      _
    $region11: #{tpu_custom_call.1} parent=1 // pred_check_branch
      %28 = sbr.rel (0) target = $region13
    $region12: #{tpu_custom_call.1} parent=1 // pred_region
      %s30 = ssub.s32 8192, 8192
      %31 = vsyncadd [#allocation6], %s30
      %s32 = sshll.u32 [#allocation5], 4
      %s33 = int_to_ptr.vmem [resolvable:$true] %s32
      %38 = dma.hbm_to_vmem [thread:$0]  %s2, 8192, %s33, [#allocation6], 128, 128, 8
    $region13: #{tpu_custom_call.1} parent=1 // pred_fallthru
      _
    // Predicated region
    $region14: #{tpu_custom_call.1} parent=1 // pred_check
      _
    $region15: #{tpu_custom_call.1} parent=1 // pred_check_branch
      %40 = sbr.rel (0) target = $region17
    $region16: #{tpu_custom_call.1} parent=1 // pred_region
      %s42 = ssub.s32 10240, 10240
      %43 = vsyncadd [#allocation6], %s42
      %s44 = sshll.u32 [#allocation7], 4
      %s45 = int_to_ptr.vmem [resolvable:$true] %s44
      %50 = dma.hbm_to_vmem [thread:$0]  %s3, 10240, %s45, [#allocation6], 128, 128, 8
    $region17: #{tpu_custom_call.1} parent=1 // pred_fallthru
      _
    // Predicated region
    $region18: #{tpu_custom_call.1} parent=1 // pred_check
      _
    $region19: #{tpu_custom_call.1} parent=1 // pred_check_branch
      %52 = sbr.rel (0) target = $region21
    $region20: #{tpu_custom_call.1} parent=1 // pred_region
      %s54 = ssub.s32 8192, 8192
      %55 = vsyncadd [#allocation9], %s54
      %s56 = sshll.u32 [#allocation8], 4
      %s57 = int_to_ptr.vmem [resolvable:$true] %s56
      %62 = dma.hbm_to_vmem [thread:$0]  %s4, 8192, %s57, [#allocation9], 512, 512, 32
    $region21: #{tpu_custom_call.1} parent=1 // pred_fallthru
      _
    // Predicated region
    $region22: #{tpu_custom_call.1} parent=1 // pred_check
      _
    $region23: #{tpu_custom_call.1} parent=1 // pred_check_branch
      %64 = sbr.rel (0) target = $region25
    $region24: #{tpu_custom_call.1} parent=1 // pred_region
      %s66 = ssub.s32 512, 512
      %67 = vsyncadd [#allocation9], %s66
      %s69 = sshll.u32 [#allocation10], 4
      %s70 = int_to_ptr.vmem [resolvable:$true] %s69
      %72 = dma.hbm_to_vmem [thread:$0]  %s5, 512, %s70, [#allocation9]
    $region25: #{tpu_custom_call.1} parent=1 // pred_fallthru
      _
    // Predicated region
    $region26: #{tpu_custom_call.1} parent=1 // pred_check
      _
    $region27: #{tpu_custom_call.1} parent=1 // pred_check_branch
      %74 = sbr.rel (0) target = $region29
    $region28: #{tpu_custom_call.1} parent=1 // pred_region
      %75 = dma.done [#allocation3], 512
    $region29: #{tpu_custom_call.1} parent=1 // pred_fallthru
      _
    // Predicated region
    $region30: #{tpu_custom_call.1} parent=1 // pred_check
      _
    $region31: #{tpu_custom_call.1} parent=1 // pred_check_branch
      %77 = sbr.rel (0) target = $region33
    $region32: #{tpu_custom_call.1} parent=1 // pred_region
      %78 = dma.done [#allocation6], 8192
    $region33: #{tpu_custom_call.1} parent=1 // pred_fallthru
      _
    // Predicated region
    $region34: #{tpu_custom_call.1} parent=1 // pred_check
      _
    $region35: #{tpu_custom_call.1} parent=1 // pred_check_branch
      %80 = sbr.rel (0) target = $region37
    $region36: #{tpu_custom_call.1} parent=1 // pred_region
      %81 = dma.done [#allocation6], 10240
    $region37: #{tpu_custom_call.1} parent=1 // pred_fallthru
      _
    // Predicated region
    $region38: #{tpu_custom_call.1} parent=1 // pred_check
      _
    $region39: #{tpu_custom_call.1} parent=1 // pred_check_branch
      %83 = sbr.rel (0) target = $region41
    $region40: #{tpu_custom_call.1} parent=1 // pred_region
      %84 = dma.done [#allocation9], 8192
    $region41: #{tpu_custom_call.1} parent=1 // pred_fallthru
      _
    // Predicated region
    $region42: #{tpu_custom_call.1} parent=1 // pred_check
      _
    $region43: #{tpu_custom_call.1} parent=1 // pred_check_branch
      %86 = sbr.rel (0) target = $region45
    $region44: #{tpu_custom_call.1} parent=1 // pred_region
      %87 = dma.done [#allocation9], 512
    $region45: #{tpu_custom_call.1} parent=1 // pred_fallthru
      _
    %v88 = vld [vmem:[#allocation2] sm:$0xff]
    %v89 = vld [vmem:[#allocation2 + $0x8] sm:$0xff]
    %v90 = vld [vmem:[#allocation2 + $0x10] sm:$0xff]
    %v91 = vld [vmem:[#allocation2 + $0x18] sm:$0xff]
    %v92 = vld [vmem:[#allocation5] sm:$0xff]
    %v93 = vld [vmem:[#allocation5 + $0x8] sm:$0xff]
    %v94 = vld [vmem:[#allocation5 + $0x10] sm:$0xff]
    %v95 = vld [vmem:[#allocation5 + $0x18] sm:$0xff]
    %v96 = vld [vmem:[#allocation5 + $0x20] sm:$0xff]
    %v97 = vld [vmem:[#allocation5 + $0x28] sm:$0xff]
    %v98 = vld [vmem:[#allocation5 + $0x30] sm:$0xff]
    %v99 = vld [vmem:[#allocation5 + $0x38] sm:$0xff]
    %v100 = vld [vmem:[#allocation5 + $0x40] sm:$0xff]
    %v101 = vld [vmem:[#allocation5 + $0x48] sm:$0xff]
    %v102 = vld [vmem:[#allocation5 + $0x50] sm:$0xff]
    %v103 = vld [vmem:[#allocation5 + $0x58] sm:$0xff]
    %v104 = vld [vmem:[#allocation5 + $0x60] sm:$0xff]
    %v105 = vld [vmem:[#allocation5 + $0x68] sm:$0xff]
    %v106 = vld [vmem:[#allocation5 + $0x70] sm:$0xff]
    %v107 = vld [vmem:[#allocation5 + $0x78] sm:$0xff]
    %v108 = vld [vmem:[#allocation5 + $0x80] sm:$0xff]
    %v109 = vld [vmem:[#allocation5 + $0x88] sm:$0xff]
    %v110 = vld [vmem:[#allocation5 + $0x90] sm:$0xff]
    %v111 = vld [vmem:[#allocation5 + $0x98] sm:$0xff]
    %v112 = vld [vmem:[#allocation5 + $0xa0] sm:$0xff]
    %v113 = vld [vmem:[#allocation5 + $0xa8] sm:$0xff]
    %v114 = vld [vmem:[#allocation5 + $0xb0] sm:$0xff]
    %v115 = vld [vmem:[#allocation5 + $0xb8] sm:$0xff]
    %v116 = vld [vmem:[#allocation5 + $0xc0] sm:$0xff]
    %v117 = vld [vmem:[#allocation5 + $0xc8] sm:$0xff]
    %v118 = vld [vmem:[#allocation5 + $0xd0] sm:$0xff]
    %v119 = vld [vmem:[#allocation5 + $0xd8] sm:$0xff]
    %v120 = vld [vmem:[#allocation5 + $0xe0] sm:$0xff]
    %v121 = vld [vmem:[#allocation5 + $0xe8] sm:$0xff]
    %v122 = vld [vmem:[#allocation5 + $0xf0] sm:$0xff]
    %v123 = vld [vmem:[#allocation5 + $0xf8] sm:$0xff]
    %v124 = vld [vmem:[#allocation5 + $0x100] sm:$0xff]
    %v125 = vld [vmem:[#allocation5 + $0x108] sm:$0xff]
    %v126 = vld [vmem:[#allocation5 + $0x110] sm:$0xff]
    %v127 = vld [vmem:[#allocation5 + $0x118] sm:$0xff]
    %v128 = vld [vmem:[#allocation5 + $0x120] sm:$0xff]
    %v129 = vld [vmem:[#allocation5 + $0x128] sm:$0xff]
    %v130 = vld [vmem:[#allocation5 + $0x130] sm:$0xff]
    %v131 = vld [vmem:[#allocation5 + $0x138] sm:$0xff]
    %v132 = vld [vmem:[#allocation5 + $0x140] sm:$0xff]
    %v133 = vld [vmem:[#allocation5 + $0x148] sm:$0xff]
    %v134 = vld [vmem:[#allocation5 + $0x150] sm:$0xff]
    %v135 = vld [vmem:[#allocation5 + $0x158] sm:$0xff]
    %v136 = vld [vmem:[#allocation5 + $0x160] sm:$0xff]
    %v137 = vld [vmem:[#allocation5 + $0x168] sm:$0xff]
    %v138 = vld [vmem:[#allocation5 + $0x170] sm:$0xff]
    %v139 = vld [vmem:[#allocation5 + $0x178] sm:$0xff]
    %v140 = vld [vmem:[#allocation5 + $0x180] sm:$0xff]
    %v141 = vld [vmem:[#allocation5 + $0x188] sm:$0xff]
    %v142 = vld [vmem:[#allocation5 + $0x190] sm:$0xff]
    %v143 = vld [vmem:[#allocation5 + $0x198] sm:$0xff]
    %v144 = vld [vmem:[#allocation5 + $0x1a0] sm:$0xff]
    %v145 = vld [vmem:[#allocation5 + $0x1a8] sm:$0xff]
    %v146 = vld [vmem:[#allocation5 + $0x1b0] sm:$0xff]
    %v147 = vld [vmem:[#allocation5 + $0x1b8] sm:$0xff]
    %v148 = vld [vmem:[#allocation5 + $0x1c0] sm:$0xff]
    %v149 = vld [vmem:[#allocation5 + $0x1c8] sm:$0xff]
    %v150 = vld [vmem:[#allocation5 + $0x1d0] sm:$0xff]
    %v151 = vld [vmem:[#allocation5 + $0x1d8] sm:$0xff]
    %v152 = vld [vmem:[#allocation5 + $0x1e0] sm:$0xff]
    %v153 = vld [vmem:[#allocation5 + $0x1e8] sm:$0xff]
    %v154 = vld [vmem:[#allocation5 + $0x1f0] sm:$0xff]
    %v155 = vld [vmem:[#allocation5 + $0x1f8] sm:$0xff]
    %v156 = vld [vmem:[#allocation10] ss:$0 sm:$0xff]
    %157 = vmatprep.subr.mxu0 0.0
    %158 = vmatpush1.msra.mxu0 %v107
    %159 = vmatprep.subr.mxu0 0.0
    %160 = vmatpush1.msra.mxu0 %v106
    %161 = vmatprep.subr.mxu0 0.0
    %162 = vmatpush1.msra.mxu0 %v105
    %163 = vmatprep.subr.mxu0 0.0
    %164 = vmatpush1.msra.mxu0 %v104
    %165 = vmatprep.subr.mxu0 0.0
    %166 = vmatpush1.msra.mxu0 %v103
    %167 = vmatprep.subr.mxu0 0.0
    %168 = vmatpush1.msra.mxu0 %v102
    %169 = vmatprep.subr.mxu0 0.0
    %170 = vmatpush1.msra.mxu0 %v101
    %171 = vmatprep.subr.mxu0 0.0
    %172 = vmatpush1.msra.mxu0 %v100
    %173 = vmatprep.subr.mxu0 0.0
    %174 = vmatpush1.msra.mxu0 %v99
    %175 = vmatprep.subr.mxu0 0.0
    %176 = vmatpush1.msra.mxu0 %v98
    %177 = vmatprep.subr.mxu0 0.0
    %178 = vmatpush1.msra.mxu0 %v97
    %179 = vmatprep.subr.mxu0 0.0
    %180 = vmatpush1.msra.mxu0 %v96
    %181 = vmatprep.subr.mxu0 0.0
    %182 = vmatpush1.msra.mxu0 %v95
    %183 = vmatprep.subr.mxu0 0.0
    %184 = vmatpush1.msra.mxu0 %v94
    %185 = vmatprep.subr.mxu0 0.0
    %186 = vmatpush1.msra.mxu0 %v93
    %187 = vmatprep.subr.mxu0 0.0
    %188 = vmatpush1.msra.mxu0 %v92
    %189 = vmatprep.subr.mxu0 0.0
    %190 = vmatpush2.msra.mxu0 %v123
    %191 = vmatprep.subr.mxu0 0.0
    %192 = vmatpush2.msra.mxu0 %v122
    %193 = vmatprep.subr.mxu0 0.0
    %194 = vmatpush2.msra.mxu0 %v121
    %195 = vmatprep.subr.mxu0 0.0
    %196 = vmatpush2.msra.mxu0 %v120
    %197 = vmatprep.subr.mxu0 0.0
    %198 = vmatpush2.msra.mxu0 %v119
    %199 = vmatprep.subr.mxu0 0.0
    %200 = vmatpush2.msra.mxu0 %v118
    %201 = vmatprep.subr.mxu0 0.0
    %202 = vmatpush2.msra.mxu0 %v117
    %203 = vmatprep.subr.mxu0 0.0
    %204 = vmatpush2.msra.mxu0 %v116
    %205 = vmatprep.subr.mxu0 0.0
    %206 = vmatpush2.msra.mxu0 %v115
    %207 = vmatprep.subr.mxu0 0.0
    %208 = vmatpush2.msra.mxu0 %v114
    %209 = vmatprep.subr.mxu0 0.0
    %210 = vmatpush2.msra.mxu0 %v113
    %211 = vmatprep.subr.mxu0 0.0
    %212 = vmatpush2.msra.mxu0 %v112
    %213 = vmatprep.subr.mxu0 0.0
    %214 = vmatpush2.msra.mxu0 %v111
    %215 = vmatprep.subr.mxu0 0.0
    %216 = vmatpush2.msra.mxu0 %v110
    %217 = vmatprep.subr.mxu0 0.0
    %218 = vmatpush2.msra.mxu0 %v109
    %219 = vmatprep.subr.mxu0 0.0
    %220 = vmatpush2.msra.mxu0 %v108
    %221 = vmatprep.mubr.f32.mxu0 %v89
    %222 = vmatmul.mubr.f32.gmra.mxu0 %v88
    %v223 = vpop.f32.mrf.mxu0
    %v224 = vadd.f32 %v156, %v223
    %v225 = vpop.f32.mrf.mxu0
    %226 = vdwg.mxu0
    %227 = vmatprep.subr.mxu0 0.0
    %228 = vmatpush1.msra.mxu0 %v139
    %229 = vmatprep.subr.mxu0 0.0
    %230 = vmatpush1.msra.mxu0 %v138
    %231 = vmatprep.subr.mxu0 0.0
    %232 = vmatpush1.msra.mxu0 %v137
    %233 = vmatprep.subr.mxu0 0.0
    %234 = vmatpush1.msra.mxu0 %v136
    %235 = vmatprep.subr.mxu0 0.0
    %236 = vmatpush1.msra.mxu0 %v135
    %237 = vmatprep.subr.mxu0 0.0
    %238 = vmatpush1.msra.mxu0 %v134
    %239 = vmatprep.subr.mxu0 0.0
    %240 = vmatpush1.msra.mxu0 %v133
    %241 = vmatprep.subr.mxu0 0.0
    %242 = vmatpush1.msra.mxu0 %v132
    %243 = vmatprep.subr.mxu0 0.0
    %244 = vmatpush1.msra.mxu0 %v131
    %245 = vmatprep.subr.mxu0 0.0
    %246 = vmatpush1.msra.mxu0 %v130
    %247 = vmatprep.subr.mxu0 0.0
    %248 = vmatpush1.msra.mxu0 %v129
    %249 = vmatprep.subr.mxu0 0.0
    %250 = vmatpush1.msra.mxu0 %v128
    %251 = vmatprep.subr.mxu0 0.0
    %252 = vmatpush1.msra.mxu0 %v127
    %253 = vmatprep.subr.mxu0 0.0
    %254 = vmatpush1.msra.mxu0 %v126
    %255 = vmatprep.subr.mxu0 0.0
    %256 = vmatpush1.msra.mxu0 %v125
    %257 = vmatprep.subr.mxu0 0.0
    %258 = vmatpush1.msra.mxu0 %v124
    %259 = vmatprep.subr.mxu0 0.0
    %260 = vmatpush2.msra.mxu0 %v155
    %261 = vmatprep.subr.mxu0 0.0
    %262 = vmatpush2.msra.mxu0 %v154
    %263 = vmatprep.subr.mxu0 0.0
    %264 = vmatpush2.msra.mxu0 %v153
    %265 = vmatprep.subr.mxu0 0.0
    %266 = vmatpush2.msra.mxu0 %v152
    %267 = vmatprep.subr.mxu0 0.0
    %268 = vmatpush2.msra.mxu0 %v151
    %269 = vmatprep.subr.mxu0 0.0
    %270 = vmatpush2.msra.mxu0 %v150
    %271 = vmatprep.subr.mxu0 0.0
    %272 = vmatpush2.msra.mxu0 %v149
    %273 = vmatprep.subr.mxu0 0.0
    %274 = vmatpush2.msra.mxu0 %v148
    %275 = vmatprep.subr.mxu0 0.0
    %276 = vmatpush2.msra.mxu0 %v147
    %277 = vmatprep.subr.mxu0 0.0
    %278 = vmatpush2.msra.mxu0 %v146
    %279 = vmatprep.subr.mxu0 0.0
    %280 = vmatpush2.msra.mxu0 %v145
    %281 = vmatprep.subr.mxu0 0.0
    %282 = vmatpush2.msra.mxu0 %v144
    %283 = vmatprep.subr.mxu0 0.0
    %284 = vmatpush2.msra.mxu0 %v143
    %285 = vmatprep.subr.mxu0 0.0
    %286 = vmatpush2.msra.mxu0 %v142
    %287 = vmatprep.subr.mxu0 0.0
    %288 = vmatpush2.msra.mxu0 %v141
    %289 = vmatprep.subr.mxu0 0.0
    %290 = vmatpush2.msra.mxu0 %v140
    %291 = vmatprep.mubr.f32.mxu0 %v91
    %292 = vmatmul.mubr.f32.gmra.mxu0 %v90
    %v293 = vpop.f32.mrf.mxu0
    %v294 = vadd.f32 %v224, %v293
    %v295 = vpop.f32.mrf.mxu0
    %296 = vdwg.mxu0
    %v297 = vmax.f32 %v294, 0.0
    %v298 = vld [vmem:[#allocation7] sm:$0xff]
    %v299 = vld [vmem:[#allocation7 + $0x8] sm:$0xff]
    %v300 = vld [vmem:[#allocation7 + $0x10] sm:$0xff]
    %v301 = vld [vmem:[#allocation7 + $0x18] sm:$0xff]
    %v302 = vld [vmem:[#allocation7 + $0x20] sm:$0xff]
    %v303 = vld [vmem:[#allocation7 + $0x28] sm:$0xff]
    %v304 = vld [vmem:[#allocation7 + $0x30] sm:$0xff]
    %v305 = vld [vmem:[#allocation7 + $0x38] sm:$0xff]
    %v306 = vld [vmem:[#allocation7 + $0x40] sm:$0xff]
    %v307 = vld [vmem:[#allocation7 + $0x48] sm:$0xff]
    %v308 = vld [vmem:[#allocation7 + $0x50] sm:$0xff]
    %v309 = vld [vmem:[#allocation7 + $0x58] sm:$0xff]
    %v310 = vld [vmem:[#allocation7 + $0x60] sm:$0xff]
    %v311 = vld [vmem:[#allocation7 + $0x68] sm:$0xff]
    %v312 = vld [vmem:[#allocation7 + $0x70] sm:$0xff]
    %v313 = vld [vmem:[#allocation7 + $0x78] sm:$0xff]
    %v314 = vld [vmem:[#allocation10 + $0x1] ss:$0 sm:$0xff]
    %315 = vmatprep.subr.mxu0 0.0
    %316 = vmatpush1.msra.mxu0 %v313
    %317 = vmatprep.subr.mxu0 0.0
    %318 = vmatpush1.msra.mxu0 %v312
    %319 = vmatprep.subr.mxu0 0.0
    %320 = vmatpush1.msra.mxu0 %v311
    %321 = vmatprep.subr.mxu0 0.0
    %322 = vmatpush1.msra.mxu0 %v310
    %323 = vmatprep.subr.mxu0 0.0
    %324 = vmatpush1.msra.mxu0 %v309
    %325 = vmatprep.subr.mxu0 0.0
    %326 = vmatpush1.msra.mxu0 %v308
    %327 = vmatprep.subr.mxu0 0.0
    %328 = vmatpush1.msra.mxu0 %v307
    %329 = vmatprep.subr.mxu0 0.0
    %330 = vmatpush1.msra.mxu0 %v306
    %331 = vmatprep.subr.mxu0 0.0
    %332 = vmatpush1.msra.mxu0 %v305
    %333 = vmatprep.subr.mxu0 0.0
    %334 = vmatpush1.msra.mxu0 %v304
    %335 = vmatprep.subr.mxu0 0.0
    %336 = vmatpush1.msra.mxu0 %v303
    %337 = vmatprep.subr.mxu0 0.0
    %338 = vmatpush1.msra.mxu0 %v302
    %339 = vmatprep.subr.mxu0 0.0
    %340 = vmatpush1.msra.mxu0 %v301
    %341 = vmatprep.subr.mxu0 0.0
    %342 = vmatpush1.msra.mxu0 %v300
    %343 = vmatprep.subr.mxu0 0.0
    %344 = vmatpush1.msra.mxu0 %v299
    %345 = vmatprep.subr.mxu0 0.0
    %346 = vmatpush1.msra.mxu0 %v298
    %347 = vmatprep.subr.mxu0 0.0
    %348 = vmatpush2.msra.mxu0 0.0
    %349 = vmatprep.subr.mxu0 0.0
    %350 = vmatpush2.msra.mxu0 0.0
    %351 = vmatprep.subr.mxu0 0.0
    %352 = vmatpush2.msra.mxu0 0.0
    %353 = vmatprep.subr.mxu0 0.0
    %354 = vmatpush2.msra.mxu0 0.0
    %355 = vmatprep.subr.mxu0 0.0
    %356 = vmatpush2.msra.mxu0 0.0
    %357 = vmatprep.subr.mxu0 0.0
    %358 = vmatpush2.msra.mxu0 0.0
    %359 = vmatprep.subr.mxu0 0.0
    %360 = vmatpush2.msra.mxu0 0.0
    %361 = vmatprep.subr.mxu0 0.0
    %362 = vmatpush2.msra.mxu0 0.0
    %363 = vmatprep.subr.mxu0 0.0
    %364 = vmatpush2.msra.mxu0 0.0
    %365 = vmatprep.subr.mxu0 0.0
    %366 = vmatpush2.msra.mxu0 0.0
    %367 = vmatprep.subr.mxu0 0.0
    %368 = vmatpush2.msra.mxu0 0.0
    %369 = vmatprep.subr.mxu0 0.0
    %370 = vmatpush2.msra.mxu0 0.0
    %371 = vmatprep.subr.mxu0 0.0
    %372 = vmatpush2.msra.mxu0 0.0
    %373 = vmatprep.subr.mxu0 0.0
    %374 = vmatpush2.msra.mxu0 0.0
    %375 = vmatprep.subr.mxu0 0.0
    %376 = vmatpush2.msra.mxu0 0.0
    %377 = vmatprep.subr.mxu0 0.0
    %378 = vmatpush2.msra.mxu0 0.0
    %379 = vmatprep.mubr.f32.mxu0 0.0
    %380 = vmatmul.mubr.f32.gmra.mxu0 %v297
    %v381 = vpop.f32.mrf.mxu0
    %v382 = vadd.f32 %v314, %v381
    %v383 = vpop.f32.mrf.mxu0
    %384 = vdwg.mxu0
    %v385 = vmax.f32 %v382, 0.0
    %v386 = vld [vmem:[#allocation7 + $0x80] sm:$0xff]
    %v387 = vld [vmem:[#allocation7 + $0x88] sm:$0xff]
    %v388 = vld [vmem:[#allocation7 + $0x90] sm:$0xff]
    %v389 = vld [vmem:[#allocation7 + $0x98] sm:$0xff]
    %v390 = vld [vmem:[#allocation7 + $0xa0] sm:$0xff]
    %v391 = vld [vmem:[#allocation7 + $0xa8] sm:$0xff]
    %v392 = vld [vmem:[#allocation7 + $0xb0] sm:$0xff]
    %v393 = vld [vmem:[#allocation7 + $0xb8] sm:$0xff]
    %v394 = vld [vmem:[#allocation7 + $0xc0] sm:$0xff]
    %v395 = vld [vmem:[#allocation7 + $0xc8] sm:$0xff]
    %v396 = vld [vmem:[#allocation7 + $0xd0] sm:$0xff]
    %v397 = vld [vmem:[#allocation7 + $0xd8] sm:$0xff]
    %v398 = vld [vmem:[#allocation7 + $0xe0] sm:$0xff]
    %v399 = vld [vmem:[#allocation7 + $0xe8] sm:$0xff]
    %v400 = vld [vmem:[#allocation7 + $0xf0] sm:$0xff]
    %v401 = vld [vmem:[#allocation7 + $0xf8] sm:$0xff]
    %v402 = vld [vmem:[#allocation10 + $0x2] ss:$0 sm:$0xff]
    %403 = vmatprep.subr.mxu0 0.0
    %404 = vmatpush1.msra.mxu0 %v401
    %405 = vmatprep.subr.mxu0 0.0
    %406 = vmatpush1.msra.mxu0 %v400
    %407 = vmatprep.subr.mxu0 0.0
    %408 = vmatpush1.msra.mxu0 %v399
    %409 = vmatprep.subr.mxu0 0.0
    %410 = vmatpush1.msra.mxu0 %v398
    %411 = vmatprep.subr.mxu0 0.0
    %412 = vmatpush1.msra.mxu0 %v397
    %413 = vmatprep.subr.mxu0 0.0
    %414 = vmatpush1.msra.mxu0 %v396
    %415 = vmatprep.subr.mxu0 0.0
    %416 = vmatpush1.msra.mxu0 %v395
    %417 = vmatprep.subr.mxu0 0.0
    %418 = vmatpush1.msra.mxu0 %v394
    %419 = vmatprep.subr.mxu0 0.0
    %420 = vmatpush1.msra.mxu0 %v393
    %421 = vmatprep.subr.mxu0 0.0
    %422 = vmatpush1.msra.mxu0 %v392
    %423 = vmatprep.subr.mxu0 0.0
    %424 = vmatpush1.msra.mxu0 %v391
    %425 = vmatprep.subr.mxu0 0.0
    %426 = vmatpush1.msra.mxu0 %v390
    %427 = vmatprep.subr.mxu0 0.0
    %428 = vmatpush1.msra.mxu0 %v389
    %429 = vmatprep.subr.mxu0 0.0
    %430 = vmatpush1.msra.mxu0 %v388
    %431 = vmatprep.subr.mxu0 0.0
    %432 = vmatpush1.msra.mxu0 %v387
    %433 = vmatprep.subr.mxu0 0.0
    %434 = vmatpush1.msra.mxu0 %v386
    %435 = vmatprep.subr.mxu0 0.0
    %436 = vmatpush2.msra.mxu0 0.0
    %437 = vmatprep.subr.mxu0 0.0
    %438 = vmatpush2.msra.mxu0 0.0
    %439 = vmatprep.subr.mxu0 0.0
    %440 = vmatpush2.msra.mxu0 0.0
    %441 = vmatprep.subr.mxu0 0.0
    %442 = vmatpush2.msra.mxu0 0.0
    %443 = vmatprep.subr.mxu0 0.0
    %444 = vmatpush2.msra.mxu0 0.0
    %445 = vmatprep.subr.mxu0 0.0
    %446 = vmatpush2.msra.mxu0 0.0
    %447 = vmatprep.subr.mxu0 0.0
    %448 = vmatpush2.msra.mxu0 0.0
    %449 = vmatprep.subr.mxu0 0.0
    %450 = vmatpush2.msra.mxu0 0.0
    %451 = vmatprep.subr.mxu0 0.0
    %452 = vmatpush2.msra.mxu0 0.0
    %453 = vmatprep.subr.mxu0 0.0
    %454 = vmatpush2.msra.mxu0 0.0
    %455 = vmatprep.subr.mxu0 0.0
    %456 = vmatpush2.msra.mxu0 0.0
    %457 = vmatprep.subr.mxu0 0.0
    %458 = vmatpush2.msra.mxu0 0.0
    %459 = vmatprep.subr.mxu0 0.0
    %460 = vmatpush2.msra.mxu0 0.0
    %461 = vmatprep.subr.mxu0 0.0
    %462 = vmatpush2.msra.mxu0 0.0
    %463 = vmatprep.subr.mxu0 0.0
    %464 = vmatpush2.msra.mxu0 0.0
    %465 = vmatprep.subr.mxu0 0.0
    %466 = vmatpush2.msra.mxu0 0.0
    %467 = vmatprep.mubr.f32.mxu0 0.0
    %468 = vmatmul.mubr.f32.gmra.mxu0 %v385
    %v469 = vpop.f32.mrf.mxu0
    %v470 = vadd.f32 %v402, %v469
    %v471 = vpop.f32.mrf.mxu0
    %472 = vdwg.mxu0
    %v473 = vmax.f32 %v470, 0.0
    %v474 = vld [vmem:[#allocation7 + $0x100] sm:$0xff]
    %v475 = vld [vmem:[#allocation7 + $0x108] sm:$0xff]
    %v476 = vld [vmem:[#allocation7 + $0x110] sm:$0xff]
    %v477 = vld [vmem:[#allocation7 + $0x118] sm:$0xff]
    %v478 = vld [vmem:[#allocation7 + $0x120] sm:$0xff]
    %v479 = vld [vmem:[#allocation7 + $0x128] sm:$0xff]
    %v480 = vld [vmem:[#allocation7 + $0x130] sm:$0xff]
    %v481 = vld [vmem:[#allocation7 + $0x138] sm:$0xff]
    %v482 = vld [vmem:[#allocation7 + $0x140] sm:$0xff]
    %v483 = vld [vmem:[#allocation7 + $0x148] sm:$0xff]
    %v484 = vld [vmem:[#allocation7 + $0x150] sm:$0xff]
    %v485 = vld [vmem:[#allocation7 + $0x158] sm:$0xff]
    %v486 = vld [vmem:[#allocation7 + $0x160] sm:$0xff]
    %v487 = vld [vmem:[#allocation7 + $0x168] sm:$0xff]
    %v488 = vld [vmem:[#allocation7 + $0x170] sm:$0xff]
    %v489 = vld [vmem:[#allocation7 + $0x178] sm:$0xff]
    %v490 = vld [vmem:[#allocation10 + $0x3] ss:$0 sm:$0xff]
    %491 = vmatprep.subr.mxu0 0.0
    %492 = vmatpush1.msra.mxu0 %v489
    %493 = vmatprep.subr.mxu0 0.0
    %494 = vmatpush1.msra.mxu0 %v488
    %495 = vmatprep.subr.mxu0 0.0
    %496 = vmatpush1.msra.mxu0 %v487
    %497 = vmatprep.subr.mxu0 0.0
    %498 = vmatpush1.msra.mxu0 %v486
    %499 = vmatprep.subr.mxu0 0.0
    %500 = vmatpush1.msra.mxu0 %v485
    %501 = vmatprep.subr.mxu0 0.0
    %502 = vmatpush1.msra.mxu0 %v484
    %503 = vmatprep.subr.mxu0 0.0
    %504 = vmatpush1.msra.mxu0 %v483
    %505 = vmatprep.subr.mxu0 0.0
    %506 = vmatpush1.msra.mxu0 %v482
    %507 = vmatprep.subr.mxu0 0.0
    %508 = vmatpush1.msra.mxu0 %v481
    %509 = vmatprep.subr.mxu0 0.0
    %510 = vmatpush1.msra.mxu0 %v480
    %511 = vmatprep.subr.mxu0 0.0
    %512 = vmatpush1.msra.mxu0 %v479
    %513 = vmatprep.subr.mxu0 0.0
    %514 = vmatpush1.msra.mxu0 %v478
    %515 = vmatprep.subr.mxu0 0.0
    %516 = vmatpush1.msra.mxu0 %v477
    %517 = vmatprep.subr.mxu0 0.0
    %518 = vmatpush1.msra.mxu0 %v476
    %519 = vmatprep.subr.mxu0 0.0
    %520 = vmatpush1.msra.mxu0 %v475
    %521 = vmatprep.subr.mxu0 0.0
    %522 = vmatpush1.msra.mxu0 %v474
    %523 = vmatprep.subr.mxu0 0.0
    %524 = vmatpush2.msra.mxu0 0.0
    %525 = vmatprep.subr.mxu0 0.0
    %526 = vmatpush2.msra.mxu0 0.0
    %527 = vmatprep.subr.mxu0 0.0
    %528 = vmatpush2.msra.mxu0 0.0
    %529 = vmatprep.subr.mxu0 0.0
    %530 = vmatpush2.msra.mxu0 0.0
    %531 = vmatprep.subr.mxu0 0.0
    %532 = vmatpush2.msra.mxu0 0.0
    %533 = vmatprep.subr.mxu0 0.0
    %534 = vmatpush2.msra.mxu0 0.0
    %535 = vmatprep.subr.mxu0 0.0
    %536 = vmatpush2.msra.mxu0 0.0
    %537 = vmatprep.subr.mxu0 0.0
    %538 = vmatpush2.msra.mxu0 0.0
    %539 = vmatprep.subr.mxu0 0.0
    %540 = vmatpush2.msra.mxu0 0.0
    %541 = vmatprep.subr.mxu0 0.0
    %542 = vmatpush2.msra.mxu0 0.0
    %543 = vmatprep.subr.mxu0 0.0
    %544 = vmatpush2.msra.mxu0 0.0
    %545 = vmatprep.subr.mxu0 0.0
    %546 = vmatpush2.msra.mxu0 0.0
    %547 = vmatprep.subr.mxu0 0.0
    %548 = vmatpush2.msra.mxu0 0.0
    %549 = vmatprep.subr.mxu0 0.0
    %550 = vmatpush2.msra.mxu0 0.0
    %551 = vmatprep.subr.mxu0 0.0
    %552 = vmatpush2.msra.mxu0 0.0
    %553 = vmatprep.subr.mxu0 0.0
    %554 = vmatpush2.msra.mxu0 0.0
    %555 = vmatprep.mubr.f32.mxu0 0.0
    %556 = vmatmul.mubr.f32.gmra.mxu0 %v473
    %v557 = vpop.f32.mrf.mxu0
    %v558 = vadd.f32 %v490, %v557
    %v559 = vpop.f32.mrf.mxu0
    %560 = vdwg.mxu0
    %v561 = vmax.f32 %v558, 0.0
    %v562 = vld [vmem:[#allocation7 + $0x180] sm:$0xff]
    %v563 = vld [vmem:[#allocation7 + $0x188] sm:$0xff]
    %v564 = vld [vmem:[#allocation7 + $0x190] sm:$0xff]
    %v565 = vld [vmem:[#allocation7 + $0x198] sm:$0xff]
    %v566 = vld [vmem:[#allocation7 + $0x1a0] sm:$0xff]
    %v567 = vld [vmem:[#allocation7 + $0x1a8] sm:$0xff]
    %v568 = vld [vmem:[#allocation7 + $0x1b0] sm:$0xff]
    %v569 = vld [vmem:[#allocation7 + $0x1b8] sm:$0xff]
    %v570 = vld [vmem:[#allocation7 + $0x1c0] sm:$0xff]
    %v571 = vld [vmem:[#allocation7 + $0x1c8] sm:$0xff]
    %v572 = vld [vmem:[#allocation7 + $0x1d0] sm:$0xff]
    %v573 = vld [vmem:[#allocation7 + $0x1d8] sm:$0xff]
    %v574 = vld [vmem:[#allocation7 + $0x1e0] sm:$0xff]
    %v575 = vld [vmem:[#allocation7 + $0x1e8] sm:$0xff]
    %v576 = vld [vmem:[#allocation7 + $0x1f0] sm:$0xff]
    %v577 = vld [vmem:[#allocation7 + $0x1f8] sm:$0xff]
    %v578 = vld [vmem:[#allocation10 + $0x4] ss:$0 sm:$0xff]
    %579 = vmatprep.subr.mxu0 0.0
    %580 = vmatpush1.msra.mxu0 %v577
    %581 = vmatprep.subr.mxu0 0.0
    %582 = vmatpush1.msra.mxu0 %v576
    %583 = vmatprep.subr.mxu0 0.0
    %584 = vmatpush1.msra.mxu0 %v575
    %585 = vmatprep.subr.mxu0 0.0
    %586 = vmatpush1.msra.mxu0 %v574
    %587 = vmatprep.subr.mxu0 0.0
    %588 = vmatpush1.msra.mxu0 %v573
    %589 = vmatprep.subr.mxu0 0.0
    %590 = vmatpush1.msra.mxu0 %v572
    %591 = vmatprep.subr.mxu0 0.0
    %592 = vmatpush1.msra.mxu0 %v571
    %593 = vmatprep.subr.mxu0 0.0
    %594 = vmatpush1.msra.mxu0 %v570
    %595 = vmatprep.subr.mxu0 0.0
    %596 = vmatpush1.msra.mxu0 %v569
    %597 = vmatprep.subr.mxu0 0.0
    %598 = vmatpush1.msra.mxu0 %v568
    %599 = vmatprep.subr.mxu0 0.0
    %600 = vmatpush1.msra.mxu0 %v567
    %601 = vmatprep.subr.mxu0 0.0
    %602 = vmatpush1.msra.mxu0 %v566
    %603 = vmatprep.subr.mxu0 0.0
    %604 = vmatpush1.msra.mxu0 %v565
    %605 = vmatprep.subr.mxu0 0.0
    %606 = vmatpush1.msra.mxu0 %v564
    %607 = vmatprep.subr.mxu0 0.0
    %608 = vmatpush1.msra.mxu0 %v563
    %609 = vmatprep.subr.mxu0 0.0
    %610 = vmatpush1.msra.mxu0 %v562
    %611 = vmatprep.subr.mxu0 0.0
    %612 = vmatpush2.msra.mxu0 0.0
    %613 = vmatprep.subr.mxu0 0.0
    %614 = vmatpush2.msra.mxu0 0.0
    %615 = vmatprep.subr.mxu0 0.0
    %616 = vmatpush2.msra.mxu0 0.0
    %617 = vmatprep.subr.mxu0 0.0
    %618 = vmatpush2.msra.mxu0 0.0
    %619 = vmatprep.subr.mxu0 0.0
    %620 = vmatpush2.msra.mxu0 0.0
    %621 = vmatprep.subr.mxu0 0.0
    %622 = vmatpush2.msra.mxu0 0.0
    %623 = vmatprep.subr.mxu0 0.0
    %624 = vmatpush2.msra.mxu0 0.0
    %625 = vmatprep.subr.mxu0 0.0
    %626 = vmatpush2.msra.mxu0 0.0
    %627 = vmatprep.subr.mxu0 0.0
    %628 = vmatpush2.msra.mxu0 0.0
    %629 = vmatprep.subr.mxu0 0.0
    %630 = vmatpush2.msra.mxu0 0.0
    %631 = vmatprep.subr.mxu0 0.0
    %632 = vmatpush2.msra.mxu0 0.0
    %633 = vmatprep.subr.mxu0 0.0
    %634 = vmatpush2.msra.mxu0 0.0
    %635 = vmatprep.subr.mxu0 0.0
    %636 = vmatpush2.msra.mxu0 0.0
    %637 = vmatprep.subr.mxu0 0.0
    %638 = vmatpush2.msra.mxu0 0.0
    %639 = vmatprep.subr.mxu0 0.0
    %640 = vmatpush2.msra.mxu0 0.0
    %641 = vmatprep.subr.mxu0 0.0
    %642 = vmatpush2.msra.mxu0 0.0
    %643 = vmatprep.mubr.f32.mxu0 0.0
    %644 = vmatmul.mubr.f32.gmra.mxu0 %v561
    %v645 = vpop.f32.mrf.mxu0
    %v646 = vadd.f32 %v578, %v645
    %v647 = vpop.f32.mrf.mxu0
    %648 = vdwg.mxu0
    %v649 = vmax.f32 %v646, 0.0
    %v650 = vld [vmem:[#allocation7 + $0x200] sm:$0xff]
    %v651 = vld [vmem:[#allocation7 + $0x208] sm:$0xff]
    %v652 = vld [vmem:[#allocation7 + $0x210] sm:$0xff]
    %v653 = vld [vmem:[#allocation7 + $0x218] sm:$0xff]
    %v654 = vld [vmem:[#allocation7 + $0x220] sm:$0xff]
    %v655 = vld [vmem:[#allocation7 + $0x228] sm:$0xff]
    %v656 = vld [vmem:[#allocation7 + $0x230] sm:$0xff]
    %v657 = vld [vmem:[#allocation7 + $0x238] sm:$0xff]
    %v658 = vld [vmem:[#allocation7 + $0x240] sm:$0xff]
    %v659 = vld [vmem:[#allocation7 + $0x248] sm:$0xff]
    %v660 = vld [vmem:[#allocation7 + $0x250] sm:$0xff]
    %v661 = vld [vmem:[#allocation7 + $0x258] sm:$0xff]
    %v662 = vld [vmem:[#allocation7 + $0x260] sm:$0xff]
    %v663 = vld [vmem:[#allocation7 + $0x268] sm:$0xff]
    %v664 = vld [vmem:[#allocation7 + $0x270] sm:$0xff]
    %v665 = vld [vmem:[#allocation7 + $0x278] sm:$0xff]
    %v666 = vld [vmem:[#allocation10 + $0x5] ss:$0 sm:$0xff]
    %667 = vmatprep.subr.mxu0 0.0
    %668 = vmatpush1.msra.mxu0 %v665
    %669 = vmatprep.subr.mxu0 0.0
    %670 = vmatpush1.msra.mxu0 %v664
    %671 = vmatprep.subr.mxu0 0.0
    %672 = vmatpush1.msra.mxu0 %v663
    %673 = vmatprep.subr.mxu0 0.0
    %674 = vmatpush1.msra.mxu0 %v662
    %675 = vmatprep.subr.mxu0 0.0
    %676 = vmatpush1.msra.mxu0 %v661
    %677 = vmatprep.subr.mxu0 0.0
    %678 = vmatpush1.msra.mxu0 %v660
    %679 = vmatprep.subr.mxu0 0.0
    %680 = vmatpush1.msra.mxu0 %v659
    %681 = vmatprep.subr.mxu0 0.0
    %682 = vmatpush1.msra.mxu0 %v658
    %683 = vmatprep.subr.mxu0 0.0
    %684 = vmatpush1.msra.mxu0 %v657
    %685 = vmatprep.subr.mxu0 0.0
    %686 = vmatpush1.msra.mxu0 %v656
    %687 = vmatprep.subr.mxu0 0.0
    %688 = vmatpush1.msra.mxu0 %v655
    %689 = vmatprep.subr.mxu0 0.0
    %690 = vmatpush1.msra.mxu0 %v654
    %691 = vmatprep.subr.mxu0 0.0
    %692 = vmatpush1.msra.mxu0 %v653
    %693 = vmatprep.subr.mxu0 0.0
    %694 = vmatpush1.msra.mxu0 %v652
    %695 = vmatprep.subr.mxu0 0.0
    %696 = vmatpush1.msra.mxu0 %v651
    %697 = vmatprep.subr.mxu0 0.0
    %698 = vmatpush1.msra.mxu0 %v650
    %699 = vmatprep.subr.mxu0 0.0
    %700 = vmatpush2.msra.mxu0 0.0
    %701 = vmatprep.subr.mxu0 0.0
    %702 = vmatpush2.msra.mxu0 0.0
    %703 = vmatprep.subr.mxu0 0.0
    %704 = vmatpush2.msra.mxu0 0.0
    %705 = vmatprep.subr.mxu0 0.0
    %706 = vmatpush2.msra.mxu0 0.0
    %707 = vmatprep.subr.mxu0 0.0
    %708 = vmatpush2.msra.mxu0 0.0
    %709 = vmatprep.subr.mxu0 0.0
    %710 = vmatpush2.msra.mxu0 0.0
    %711 = vmatprep.subr.mxu0 0.0
    %712 = vmatpush2.msra.mxu0 0.0
    %713 = vmatprep.subr.mxu0 0.0
    %714 = vmatpush2.msra.mxu0 0.0
    %715 = vmatprep.subr.mxu0 0.0
    %716 = vmatpush2.msra.mxu0 0.0
    %717 = vmatprep.subr.mxu0 0.0
    %718 = vmatpush2.msra.mxu0 0.0
    %719 = vmatprep.subr.mxu0 0.0
    %720 = vmatpush2.msra.mxu0 0.0
    %721 = vmatprep.subr.mxu0 0.0
    %722 = vmatpush2.msra.mxu0 0.0
    %723 = vmatprep.subr.mxu0 0.0
    %724 = vmatpush2.msra.mxu0 0.0
    %725 = vmatprep.subr.mxu0 0.0
    %726 = vmatpush2.msra.mxu0 0.0
    %727 = vmatprep.subr.mxu0 0.0
    %728 = vmatpush2.msra.mxu0 0.0
    %729 = vmatprep.subr.mxu0 0.0
    %730 = vmatpush2.msra.mxu0 0.0
    %731 = vmatprep.mubr.f32.mxu0 0.0
    %732 = vmatmul.mubr.f32.gmra.mxu0 %v649
    %v733 = vpop.f32.mrf.mxu0
    %v734 = vadd.f32 %v666, %v733
    %v735 = vpop.f32.mrf.mxu0
    %736 = vdwg.mxu0
    %v737 = vmax.f32 %v734, 0.0
    %v738 = vld [vmem:[%s1] sm:$0xff]
    %v739 = vld [vmem:[#allocation8] sm:$0xff]
    %v740 = vld [vmem:[#allocation8 + $0x8] sm:$0xff]
    %v741 = vld [vmem:[#allocation8 + $0x10] sm:$0xff]
    %v742 = vld [vmem:[#allocation8 + $0x18] sm:$0xff]
    %v743 = vld [vmem:[#allocation8 + $0x20] sm:$0xff]
    %v744 = vld [vmem:[#allocation8 + $0x28] sm:$0xff]
    %v745 = vld [vmem:[#allocation8 + $0x30] sm:$0xff]
    %v746 = vld [vmem:[#allocation8 + $0x38] sm:$0xff]
    %v747 = vld [vmem:[#allocation8 + $0x40] sm:$0xff]
    %v748 = vld [vmem:[#allocation8 + $0x48] sm:$0xff]
    %v749 = vld [vmem:[#allocation8 + $0x50] sm:$0xff]
    %v750 = vld [vmem:[#allocation8 + $0x58] sm:$0xff]
    %v751 = vld [vmem:[#allocation8 + $0x60] sm:$0xff]
    %v752 = vld [vmem:[#allocation8 + $0x68] sm:$0xff]
    %v753 = vld [vmem:[#allocation8 + $0x70] sm:$0xff]
    %v754 = vld [vmem:[#allocation8 + $0x78] sm:$0xff]
    %v755 = vld [vmem:[#allocation8 + $0x80] sm:$0xff]
    %v756 = vld [vmem:[#allocation8 + $0x88] sm:$0xff]
    %v757 = vld [vmem:[#allocation8 + $0x90] sm:$0xff]
    %v758 = vld [vmem:[#allocation8 + $0x98] sm:$0xff]
    %v759 = vld [vmem:[#allocation8 + $0xa0] sm:$0xff]
    %v760 = vld [vmem:[#allocation8 + $0xa8] sm:$0xff]
    %v761 = vld [vmem:[#allocation8 + $0xb0] sm:$0xff]
    %v762 = vld [vmem:[#allocation8 + $0xb8] sm:$0xff]
    %v763 = vld [vmem:[#allocation8 + $0xc0] sm:$0xff]
    %v764 = vld [vmem:[#allocation8 + $0xc8] sm:$0xff]
    %v765 = vld [vmem:[#allocation8 + $0xd0] sm:$0xff]
    %v766 = vld [vmem:[#allocation8 + $0xd8] sm:$0xff]
    %v767 = vld [vmem:[#allocation8 + $0xe0] sm:$0xff]
    %v768 = vld [vmem:[#allocation8 + $0xe8] sm:$0xff]
    %v769 = vld [vmem:[#allocation8 + $0xf0] sm:$0xff]
    %v770 = vld [vmem:[#allocation8 + $0xf8] sm:$0xff]
    %v771 = vld [vmem:[#allocation8 + $0x100] sm:$0xff]
    %v772 = vld [vmem:[#allocation8 + $0x108] sm:$0xff]
    %v773 = vld [vmem:[#allocation8 + $0x110] sm:$0xff]
    %v774 = vld [vmem:[#allocation8 + $0x118] sm:$0xff]
    %v775 = vld [vmem:[#allocation8 + $0x120] sm:$0xff]
    %v776 = vld [vmem:[#allocation8 + $0x128] sm:$0xff]
    %v777 = vld [vmem:[#allocation8 + $0x130] sm:$0xff]
    %v778 = vld [vmem:[#allocation8 + $0x138] sm:$0xff]
    %v779 = vld [vmem:[#allocation8 + $0x140] sm:$0xff]
    %v780 = vld [vmem:[#allocation8 + $0x148] sm:$0xff]
    %v781 = vld [vmem:[#allocation8 + $0x150] sm:$0xff]
    %v782 = vld [vmem:[#allocation8 + $0x158] sm:$0xff]
    %v783 = vld [vmem:[#allocation8 + $0x160] sm:$0xff]
    %v784 = vld [vmem:[#allocation8 + $0x168] sm:$0xff]
    %v785 = vld [vmem:[#allocation8 + $0x170] sm:$0xff]
    %v786 = vld [vmem:[#allocation8 + $0x178] sm:$0xff]
    %v787 = vld [vmem:[#allocation8 + $0x180] sm:$0xff]
    %v788 = vld [vmem:[#allocation8 + $0x188] sm:$0xff]
    %v789 = vld [vmem:[#allocation8 + $0x190] sm:$0xff]
    %v790 = vld [vmem:[#allocation8 + $0x198] sm:$0xff]
    %v791 = vld [vmem:[#allocation8 + $0x1a0] sm:$0xff]
    %v792 = vld [vmem:[#allocation8 + $0x1a8] sm:$0xff]
    %v793 = vld [vmem:[#allocation8 + $0x1b0] sm:$0xff]
    %v794 = vld [vmem:[#allocation8 + $0x1b8] sm:$0xff]
    %v795 = vld [vmem:[#allocation8 + $0x1c0] sm:$0xff]
    %v796 = vld [vmem:[#allocation8 + $0x1c8] sm:$0xff]
    %v797 = vld [vmem:[#allocation8 + $0x1d0] sm:$0xff]
    %v798 = vld [vmem:[#allocation8 + $0x1d8] sm:$0xff]
    %v799 = vld [vmem:[#allocation8 + $0x1e0] sm:$0xff]
    %v800 = vld [vmem:[#allocation8 + $0x1e8] sm:$0xff]
    %v801 = vld [vmem:[#allocation8 + $0x1f0] sm:$0xff]
    %v802 = vld [vmem:[#allocation8 + $0x1f8] sm:$0xff]
    %s803 = scalar_lea.vmem [#allocation10], 7
    %v804 = vld [vmem:[%s803] ss:$8 sm:$0xf]
    %806 = vset.pattern.permute.xlu0 0
    %807 = vperm.xlu0 %806, %v738
    %v808 = vpop.permute.xlu0 %807
    %v811 = vlaneseq
    %v812 = vshrl.u32 %v811, 7
    %v813 = vsub.s32 0, %v812
    %v814 = vrot.slane %v804, %v813
    %v815 = vlaneseq
    %v816 = vshrl.u32 %v815, 7
    %v817 = vsub.s32 1, %v816
    %v818 = vrot.slane %v804, %v817
    %v819 = vlaneseq
    %v820 = vshrl.u32 %v819, 7
    %v821 = vsub.s32 2, %v820
    %v822 = vrot.slane %v804, %v821
    %v823 = vlaneseq
    %v824 = vshrl.u32 %v823, 7
    %v825 = vsub.s32 3, %v824
    %v826 = vrot.slane %v804, %v825
    %v831 = vmul.f32 %v808, %v814
    %v832 = vmul.f32 %v808, %v818
    %v833 = vmul.f32 %v808, %v822
    %v834 = vmul.f32 %v808, %v826
    %835 = vmatprep.subr.mxu0 %v800
    %836 = vmatpush1.msra.mxu0 %v799
    %837 = vmatprep.subr.mxu0 %v796
    %838 = vmatpush1.msra.mxu0 %v795
    %839 = vmatprep.subr.mxu0 %v792
    %840 = vmatpush1.msra.mxu0 %v791
    %841 = vmatprep.subr.mxu0 %v788
    %842 = vmatpush1.msra.mxu0 %v787
    %843 = vmatprep.subr.mxu0 %v784
    %844 = vmatpush1.msra.mxu0 %v783
    %845 = vmatprep.subr.mxu0 %v780
    %846 = vmatpush1.msra.mxu0 %v779
    %847 = vmatprep.subr.mxu0 %v776
    %848 = vmatpush1.msra.mxu0 %v775
    %849 = vmatprep.subr.mxu0 %v772
    %850 = vmatpush1.msra.mxu0 %v771
    %851 = vmatprep.subr.mxu0 %v768
    %852 = vmatpush1.msra.mxu0 %v767
    %853 = vmatprep.subr.mxu0 %v764
    %854 = vmatpush1.msra.mxu0 %v763
    %855 = vmatprep.subr.mxu0 %v760
    %856 = vmatpush1.msra.mxu0 %v759
    %857 = vmatprep.subr.mxu0 %v756
    %858 = vmatpush1.msra.mxu0 %v755
    %859 = vmatprep.subr.mxu0 %v752
    %860 = vmatpush1.msra.mxu0 %v751
    %861 = vmatprep.subr.mxu0 %v748
    %862 = vmatpush1.msra.mxu0 %v747
    %863 = vmatprep.subr.mxu0 %v744
    %864 = vmatpush1.msra.mxu0 %v743
    %865 = vmatprep.subr.mxu0 %v740
    %866 = vmatpush1.msra.mxu0 %v739
    %867 = vmatprep.subr.mxu0 0.0
    %868 = vmatpush2.msra.mxu0 0.0
    %869 = vmatprep.subr.mxu0 0.0
    %870 = vmatpush2.msra.mxu0 0.0
    %871 = vmatprep.subr.mxu0 0.0
    %872 = vmatpush2.msra.mxu0 0.0
    %873 = vmatprep.subr.mxu0 0.0
    %874 = vmatpush2.msra.mxu0 0.0
    %875 = vmatprep.subr.mxu0 0.0
    %876 = vmatpush2.msra.mxu0 0.0
    %877 = vmatprep.subr.mxu0 0.0
    %878 = vmatpush2.msra.mxu0 0.0
    %879 = vmatprep.subr.mxu0 0.0
    %880 = vmatpush2.msra.mxu0 0.0
    %881 = vmatprep.subr.mxu0 0.0
    %882 = vmatpush2.msra.mxu0 0.0
    %883 = vmatprep.subr.mxu0 0.0
    %884 = vmatpush2.msra.mxu0 0.0
    %885 = vmatprep.subr.mxu0 0.0
    %886 = vmatpush2.msra.mxu0 0.0
    %887 = vmatprep.subr.mxu0 0.0
    %888 = vmatpush2.msra.mxu0 0.0
    %889 = vmatprep.subr.mxu0 0.0
    %890 = vmatpush2.msra.mxu0 0.0
    %891 = vmatprep.subr.mxu0 0.0
    %892 = vmatpush2.msra.mxu0 0.0
    %893 = vmatprep.subr.mxu0 0.0
    %894 = vmatpush2.msra.mxu0 0.0
    %895 = vmatprep.subr.mxu0 0.0
    %896 = vmatpush2.msra.mxu0 0.0
    %897 = vmatprep.subr.mxu0 0.0
    %898 = vmatpush2.msra.mxu0 0.0
    %899 = vmatprep.mubr.f32.mxu0 0.0
    %900 = vmatmul.mubr.f32.gmra.mxu0 %v737
    %v901 = vpop.f32.mrf.mxu0
    %v902 = vadd.f32 %v831, %v901
    %v903 = vpop.f32.mrf.mxu0
    %v904 = vadd.f32 %v832, %v903
    %905 = vdwg.mxu0
    %906 = vmatprep.subr.mxu0 %v802
    %907 = vmatpush1.msra.mxu0 %v801
    %908 = vmatprep.subr.mxu0 %v798
    %909 = vmatpush1.msra.mxu0 %v797
    %910 = vmatprep.subr.mxu0 %v794
    %911 = vmatpush1.msra.mxu0 %v793
    %912 = vmatprep.subr.mxu0 %v790
    %913 = vmatpush1.msra.mxu0 %v789
    %914 = vmatprep.subr.mxu0 %v786
    %915 = vmatpush1.msra.mxu0 %v785
    %916 = vmatprep.subr.mxu0 %v782
    %917 = vmatpush1.msra.mxu0 %v781
    %918 = vmatprep.subr.mxu0 %v778
    %919 = vmatpush1.msra.mxu0 %v777
    %920 = vmatprep.subr.mxu0 %v774
    %921 = vmatpush1.msra.mxu0 %v773
    %922 = vmatprep.subr.mxu0 %v770
    %923 = vmatpush1.msra.mxu0 %v769
    %924 = vmatprep.subr.mxu0 %v766
    %925 = vmatpush1.msra.mxu0 %v765
    %926 = vmatprep.subr.mxu0 %v762
    %927 = vmatpush1.msra.mxu0 %v761
    %928 = vmatprep.subr.mxu0 %v758
    %929 = vmatpush1.msra.mxu0 %v757
    %930 = vmatprep.subr.mxu0 %v754
    %931 = vmatpush1.msra.mxu0 %v753
    %932 = vmatprep.subr.mxu0 %v750
    %933 = vmatpush1.msra.mxu0 %v749
    %934 = vmatprep.subr.mxu0 %v746
    %935 = vmatpush1.msra.mxu0 %v745
    %936 = vmatprep.subr.mxu0 %v742
    %937 = vmatpush1.msra.mxu0 %v741
    %938 = vmatprep.subr.mxu0 0.0
    %939 = vmatpush2.msra.mxu0 0.0
    %940 = vmatprep.subr.mxu0 0.0
    %941 = vmatpush2.msra.mxu0 0.0
    %942 = vmatprep.subr.mxu0 0.0
    %943 = vmatpush2.msra.mxu0 0.0
    %944 = vmatprep.subr.mxu0 0.0
    %945 = vmatpush2.msra.mxu0 0.0
    %946 = vmatprep.subr.mxu0 0.0
    %947 = vmatpush2.msra.mxu0 0.0
    %948 = vmatprep.subr.mxu0 0.0
    %949 = vmatpush2.msra.mxu0 0.0
    %950 = vmatprep.subr.mxu0 0.0
    %951 = vmatpush2.msra.mxu0 0.0
    %952 = vmatprep.subr.mxu0 0.0
    %953 = vmatpush2.msra.mxu0 0.0
    %954 = vmatprep.subr.mxu0 0.0
    %955 = vmatpush2.msra.mxu0 0.0
    %956 = vmatprep.subr.mxu0 0.0
    %957 = vmatpush2.msra.mxu0 0.0
    %958 = vmatprep.subr.mxu0 0.0
    %959 = vmatpush2.msra.mxu0 0.0
    %960 = vmatprep.subr.mxu0 0.0
    %961 = vmatpush2.msra.mxu0 0.0
    %962 = vmatprep.subr.mxu0 0.0
    %963 = vmatpush2.msra.mxu0 0.0
    %964 = vmatprep.subr.mxu0 0.0
    %965 = vmatpush2.msra.mxu0 0.0
    %966 = vmatprep.subr.mxu0 0.0
    %967 = vmatpush2.msra.mxu0 0.0
    %968 = vmatprep.subr.mxu0 0.0
    %969 = vmatpush2.msra.mxu0 0.0
    %970 = vmatprep.mubr.f32.mxu0 0.0
    %971 = vmatmul.mubr.f32.gmra.mxu0 %v737
    %v972 = vpop.f32.mrf.mxu0
    %v973 = vadd.f32 %v833, %v972
    %v974 = vpop.f32.mrf.mxu0
    %v975 = vadd.f32 %v834, %v974
    %976 = vdwg.mxu0
    %s977 = scalar_lea.vmem [#allocation10], 6
    %v978 = vld [vmem:[%s977] ss:$8 sm:$0xf]
    %v980 = vlaneseq
    %v981 = vshrl.u32 %v980, 7
    %v982 = vsub.s32 0, %v981
    %v983 = vrot.slane %v978, %v982
    %v984 = vlaneseq
    %v985 = vshrl.u32 %v984, 7
    %v986 = vsub.s32 1, %v985
    %v987 = vrot.slane %v978, %v986
    %v988 = vlaneseq
    %v989 = vshrl.u32 %v988, 7
    %v990 = vsub.s32 2, %v989
    %v991 = vrot.slane %v978, %v990
    %v992 = vlaneseq
    %v993 = vshrl.u32 %v992, 7
    %v994 = vsub.s32 3, %v993
    %v995 = vrot.slane %v978, %v994
    %v1000 = vadd.f32 %v902, %v983
    %v1001 = vadd.f32 %v904, %v987
    %v1002 = vadd.f32 %v973, %v991
    %v1003 = vadd.f32 %v975, %v995
    %1004 = vst [vmem:[#allocation11] sm:$0xff] %v1000
    %1005 = vst [vmem:[#allocation11 + $0x8] sm:$0xff] %v1001
    %1006 = vst [vmem:[#allocation11 + $0x10] sm:$0xff] %v1002
    %1007 = vst [vmem:[#allocation11 + $0x18] sm:$0xff] %v1003
    // Predicated region
    $region46: #{tpu_custom_call.1} parent=1 // pred_check
      _
    $region47: #{tpu_custom_call.1} parent=1 // pred_check_branch
      %1009 = sbr.rel (0) target = $region49
    $region48: #{tpu_custom_call.1} parent=1 // pred_region
      %s1011 = ssub.s32 512, 512
      %1012 = vsyncadd [#allocation4], %s1011
      %s1014 = sshll.u32 [#allocation11], 4
      %s1015 = int_to_ptr.vmem [resolvable:$true] %s1014
      %1017 = dma.vmem_to_hbm [thread:$0]  %s1015, 512, %s6, [#allocation4]
    $region49: #{tpu_custom_call.1} parent=1 // pred_fallthru
      _
    // Predicated region
    $region50: #{tpu_custom_call.1} parent=1 // pred_check
      _
    $region51: #{tpu_custom_call.1} parent=1 // pred_check_branch
      %1019 = sbr.rel (0) target = $region53
    $region52: #{tpu_custom_call.1} parent=1 // pred_region
      %1020 = dma.done [#allocation4], 512
    $region53: #{tpu_custom_call.1} parent=1 // pred_fallthru
      _
    %1021 = vsyncpa [#allocation3], 1
    %1022 = vsyncpa [#allocation6], 1
    %1023 = vsyncpa [#allocation9], 1
    %1024 = vsyncpa [#allocation4], 1

</llo_original>
